<compile_context>
chip_gen: v5e
topology: v5e:2x2
jax: 0.10.0
libtpu: 0.0.40
codegen_flags: <defaults>
</compile_context>

<pallas_src>
import functools
import math

import jax
import jax.numpy as jnp
from jax import lax
from jax.experimental import pallas as pl
from jax.experimental.pallas import tpu as pltpu
import numpy as np


# ---------------------------------------------------------------------------
# Stage 1: batch-invariant prep (supports softmax + bias), runs once per call.
# ---------------------------------------------------------------------------
def _prep_kernel(e_ref, bpool_ref, s_ref, bias_ref):
    e = e_ref[...].astype(jnp.float32)                         # (N, D)
    # relu(E E^T) without an explicit transpose: contract both on the D axis.
    s = lax.dot_general(e, e, (((1,), (1,)), ((), ())),
                        preferred_element_type=jnp.float32)    # (N, N)
    s = jnp.maximum(s, 0.0)
    # Row softmax. Exact division (not approx reciprocal): this runs exactly once
    # per forward, so it is perf-irrelevant, and exactness keeps the 1e-4 tolerance.
    s_max = jnp.max(s, axis=1, keepdims=True)
    p = jnp.exp(s - s_max)
    s_ref[...] = p / jnp.sum(p, axis=1, keepdims=True)
    bias_ref[...] = jnp.dot(e, bpool_ref[...].astype(jnp.float32),
                            preferred_element_type=jnp.float32)  # (N, C_out)


# ---------------------------------------------------------------------------
# Stage 2: graph convolution over batch tiles (lane-dense slabs, MXU matmuls).
# ---------------------------------------------------------------------------
def _gconv_kernel(x_ref, e_ref, wflat_ref, s_ref, bias_ref, o_ref,
                  *, tb, c_in, c_out, d):
    # x_ref: (N, TB*C_in) slab for this batch tile; s_ref: (N, N); e_ref: (N, D);
    # wflat_ref: (D*C_in, C_out); bias_ref: (N, C_out); o_ref: (N, TB*C_out).
    x = x_ref[...].astype(jnp.float32)                         # (N, TB*C_in)
    n = x.shape[0]

    # supports = I + S  =>  x_g = x + S @ x   (no identity matrix materialized).
    x_g = x + jnp.dot(s_ref[...], x, preferred_element_type=jnp.float32)

    # Fused per-node weight gather + contraction on the MXU:
    #   out[n,b,o] = sum_{d,i} e[n,d] * x_g[n,b,i] * W[d,i,o] + bias[n,o]
    # Build z[n,b,(d,i)] = e[n,d] * x_g[n,b,i] (cheap VPU broadcast), then one matmul.
    x_g3 = x_g.reshape(n, tb, c_in)                            # (N, TB, C_in)
    e = e_ref[...].astype(jnp.float32)                         # (N, D)
    z = (e[:, None, :, None] * x_g3[:, :, None, :]).reshape(n * tb, d * c_in)
    out = jnp.dot(z, wflat_ref[...], preferred_element_type=jnp.float32)
    out = out.reshape(n, tb, c_out) + bias_ref[...][:, None, :]

    # Lane-dense store.
    o_ref[...] = out.reshape(n, tb * c_out).astype(o_ref.dtype)


def _choose_tb(B, N, C_in, C_out, D):
    """Batch-tile size: keep the (N*TB, D*C_in) z intermediate under ~8 MiB
    (safe for v7x's 64 MiB VMEM with double-buffered slabs) and keep the
    lane-dense blocks legal (TB*C_in and TB*C_out multiples of 128 when tiled)."""
    budget_elems = (8 * 1024 * 1024) // 4
    tb = max(1, budget_elems // max(1, N * D * C_in))
    if tb >= B:
        return B  # single grid step: blocks equal full array dims, always legal
    def lane_step(c):
        return 128 // math.gcd(128, c)
    si, so = lane_step(C_in), lane_step(C_out)
    l = si * so // math.gcd(si, so)
    tb = max(l, (tb // l) * l)
    return int(tb)


def avwgcn_forward(x, node_embeddings, weights_pool, bias_pool, *, tb=None):
    B, N, C_in = x.shape
    D, C_in2, C_out = weights_pool.shape
    assert C_in2 == C_in and node_embeddings.shape == (N, D)

    # --- Stage 1: batch-invariant prep (one invocation, whole arrays in VMEM) ---
    supports_s, bias = pl.pallas_call(
        _prep_kernel,
        out_shape=(jax.ShapeDtypeStruct((N, N), jnp.float32),
                   jax.ShapeDtypeStruct((N, C_out), jnp.float32)),
    )(node_embeddings, bias_pool)

    # --- Stage 2: batched graph conv ---
    if tb is None:
        tb = _choose_tb(B, N, C_in, C_out, D)
    b_pad = -(-B // tb) * tb

    # Wrapper-side layout plumbing: lane-dense (N, B*C_in) slab.
    x_t = jnp.transpose(x, (1, 0, 2))                          # (N, B, C_in)
    if b_pad != B:
        x_t = jnp.pad(x_t, ((0, 0), (0, b_pad - B), (0, 0)))
    x2 = x_t.reshape(N, b_pad * C_in)
    wflat = weights_pool.reshape(D * C_in, C_out)

    kernel = functools.partial(_gconv_kernel, tb=tb, c_in=C_in, c_out=C_out, d=D)
    out2 = pl.pallas_call(
        kernel,
        out_shape=jax.ShapeDtypeStruct((N, b_pad * C_out), x.dtype),
        grid_spec=pltpu.PrefetchScalarGridSpec(
            num_scalar_prefetch=0,
            grid=(b_pad // tb,),
            in_specs=[
                pl.BlockSpec((N, tb * C_in), lambda b: (0, b)),
                pl.BlockSpec((N, D), lambda b: (0, 0)),
                pl.BlockSpec((D * C_in, C_out), lambda b: (0, 0)),
                pl.BlockSpec((N, N), lambda b: (0, 0)),
                pl.BlockSpec((N, C_out), lambda b: (0, 0)),
            ],
            out_specs=pl.BlockSpec((N, tb * C_out), lambda b: (0, b)),
        ),
        compiler_params=pltpu.CompilerParams(
            dimension_semantics=("parallel",)),  # no cross-step state -> safe to shard
    )(x2, node_embeddings, wflat, supports_s, bias)

    out = out2.reshape(N, b_pad, C_out)[:, :B, :]
    return jnp.transpose(out, (1, 0, 2))                       # (B, N, C_out)


def avwgcn_reference(x, e, wpool, bpool):
    s = jax.nn.softmax(jnp.maximum(e @ e.T, 0.0), axis=1)
    supports = jnp.eye(e.shape[0], dtype=x.dtype) + s
    weights = jnp.einsum('nd,dio->nio', e, wpool)
    bias = e @ bpool
    x_g = jnp.einsum('nm,bmc->bnc', supports, x)
    return jnp.einsum('bni,nio->bno', x_g, weights) + bias


if __name__ == "__main__":
    # Small shapes consistent with the module: batch=2, num_nodes=16,
    # dim_in=4, dim_out=8, embed_dim=8.
    B, N, C_in, C_out, D = 2, 16, 4, 8, 8
    key = jax.random.PRNGKey(0)
    k1, k2, k3, k4 = jax.random.split(key, 4)
    x = jax.random.normal(k1, (B, N, C_in), dtype=jnp.float32)
    node_embeddings = jax.random.normal(k2, (N, D), dtype=jnp.float32)
    weights_pool = 0.1 * jax.random.normal(k3, (D, C_in, C_out), dtype=jnp.float32)
    bias_pool = 0.1 * jax.random.normal(k4, (D, C_out), dtype=jnp.float32)

    out = avwgcn_forward(x, node_embeddings, weights_pool, bias_pool)
    out = jax.block_until_ready(out)

    ref = avwgcn_reference(x, node_embeddings, weights_pool, bias_pool)
    if not np.allclose(np.asarray(out), np.asarray(ref), atol=1e-4, rtol=1e-4):
        raise AssertionError("Pallas output mismatch vs JAX reference")
    print("KERNEL_OK")
</pallas_src>

<mosaic_0001>
module attributes {stable_mosaic.version = 11 : i64} {
  func.func @_prep_kernel(%arg0: memref<16x8xf32, #tpu.memory_space<vmem>>, %arg1: memref<8x8xf32, #tpu.memory_space<vmem>>, %arg2: memref<16x16xf32, #tpu.memory_space<vmem>>, %arg3: memref<16x8xf32, #tpu.memory_space<vmem>>) attributes {dimension_semantics = [], scalar_prefetch = 0 : i64, scratch_operands = 0 : i64, tpu.core_type = #tpu.core_type<tc>} {
    %c0 = arith.constant 0 : index
    %c0_0 = arith.constant 0 : index
    %0 = vector.load %arg0[%c0, %c0_0] : memref<16x8xf32, #tpu.memory_space<vmem>>, vector<16x8xf32>
    %cst = arith.constant dense<0.000000e+00> : vector<16x16xf32>
    %1 = tpu.matmul %0, %0, %cst {dimension_numbers = #tpu.dot_dimension_numbers<[1], [1], [0], [0], [0, 0, 1, 0], [], []>} : vector<16x8xf32>, vector<16x8xf32>, vector<16x16xf32> -> vector<16x16xf32>
    %cst_1 = arith.constant 0.000000e+00 : f32
    %2 = vector.broadcast %cst_1 : f32 to vector<16x16xf32>
    %3 = arith.maximumf %1, %2 : vector<16x16xf32>
    %cst_2 = arith.constant dense<0xFF800000> : vector<16xf32>
    %4 = vector.multi_reduction <maximumf>, %3, %cst_2 [1] : vector<16x16xf32> to vector<16xf32>
    %5 = vector.shape_cast %4 : vector<16xf32> to vector<16x1xf32>
    %6 = vector.broadcast %5 : vector<16x1xf32> to vector<16x16xf32>
    %7 = arith.subf %3, %6 : vector<16x16xf32>
    %8 = math.exp %7 : vector<16x16xf32>
    %cst_3 = arith.constant dense<0.000000e+00> : vector<16xf32>
    %9 = vector.multi_reduction <add>, %8, %cst_3 [1] : vector<16x16xf32> to vector<16xf32>
    %10 = vector.shape_cast %9 : vector<16xf32> to vector<16x1xf32>
    %11 = vector.broadcast %10 : vector<16x1xf32> to vector<16x16xf32>
    %12 = arith.divf %8, %11 : vector<16x16xf32>
    %c0_4 = arith.constant 0 : index
    %c0_5 = arith.constant 0 : index
    %13 = vector.load %arg2[%c0_4, %c0_5] : memref<16x16xf32, #tpu.memory_space<vmem>>, vector<16x16xf32>
    tpu.vector_store %arg2[%c0_4, %c0_5], %12 {strides = array<i32>} : memref<16x16xf32, #tpu.memory_space<vmem>>, vector<16x16xf32>,
    %c0_6 = arith.constant 0 : index
    %c0_7 = arith.constant 0 : index
    %14 = vector.load %arg1[%c0_6, %c0_7] : memref<8x8xf32, #tpu.memory_space<vmem>>, vector<8x8xf32>
    %cst_8 = arith.constant dense<0.000000e+00> : vector<16x8xf32>
    %15 = tpu.matmul %0, %14, %cst_8 {dimension_numbers = #tpu.dot_dimension_numbers<[1], [0], [0], [1], [0, 0, 1, 1], [], []>} : vector<16x8xf32>, vector<8x8xf32>, vector<16x8xf32> -> vector<16x8xf32>
    %c0_9 = arith.constant 0 : index
    %c0_10 = arith.constant 0 : index
    %16 = vector.load %arg3[%c0_9, %c0_10] : memref<16x8xf32, #tpu.memory_space<vmem>>, vector<16x8xf32>
    tpu.vector_store %arg3[%c0_9, %c0_10], %15 {strides = array<i32>} : memref<16x8xf32, #tpu.memory_space<vmem>>, vector<16x8xf32>,
    return
  }
}

</mosaic_0001>

<llo_original>
// kernel: tpu_custom_call.1
$region0: #{tpu_custom_call.1}
  #allocation0 [shape = 'u32[]', space=smem, size = 0x4, offset = 0x4, fixed_abs, tag = 'smem constant byte address 0x4 - core index']
  #allocation1 [shape = 'u32[72,128]{1,0:T(1,128)}', space=vmem, size = 0x9000, scoped, tag = 'internal scratch']
  %s0 = inlined_call_operand.vmem [shape: f32[16,8], index: 0, kind: input, shape index: {}]
  %s1 = inlined_call_operand.vmem [shape: f32[8,8], index: 1, kind: input, shape index: {}]
  %s2 = inlined_call_operand.hbm [shape: f32[16,16], index: 2, kind: output, shape index: {0}]
  %s3 = inlined_call_operand.vmem [shape: f32[16,8], index: 3, kind: output, shape index: {1}]
  %4 = xla_tuple %s2, %s3
  %s5 = sld [smem:[#allocation0]]
  $region26: #{tpu_custom_call.1} parent=0
    _
  %s7 = ssub.s32 1, %s5
  %s8 = scalar_select 0, %s7, %s5
  $region1: #{tpu_custom_call.1} parent=0
    #allocation2 [shape = 'u8[8192]{0}', space=vmem, size = 0x2000, scoped, tag = 'output window, operand 0, single buffered']
    #allocation3 [shape = 's32[1]{0}', space=sflag, size = 0x4, scoped, tag = 'scoped memory for tpu_custom_call.1']
    %9 = vsyncpa [#allocation3], 0
    // Predicated region
    $region2: #{tpu_custom_call.1} parent=1 // pred_check
      _
    $region3: #{tpu_custom_call.1} parent=1 // pred_check_branch
      %11 = sbr.rel (0) target = $region5
    $region4: #{tpu_custom_call.1} parent=1 // pred_region
      _
    $region5: #{tpu_custom_call.1} parent=1 // pred_fallthru
      _
    // Predicated region
    $region6: #{tpu_custom_call.1} parent=1 // pred_check
      _
    $region7: #{tpu_custom_call.1} parent=1 // pred_check_branch
      %13 = sbr.rel (0) target = $region9
    $region8: #{tpu_custom_call.1} parent=1 // pred_region
      _
    $region9: #{tpu_custom_call.1} parent=1 // pred_fallthru
      _
    %v14 = vld [vmem:[%s0] sm:$0xff]
    %v15 = vld [vmem:[%s0 + $0x8] sm:$0xff]
    %vm16 = vcmask 64512
    %v18 = vsel %vm16, %v14, 0
    %v21 = vsel %vm16, %v15, 0
    %23 = vmatpush.xpose.msra.mxu0 0.0
    %24 = vmatpush.xpose.msra.mxu0 0.0
    %25 = vmatpush.xpose.msra.mxu0 0.0
    %26 = vmatpush.xpose.msra.mxu0 0.0
    %27 = vmatpush.xpose.msra.mxu0 0.0
    %28 = vmatpush.xpose.msra.mxu0 0.0
    %29 = vmatpush.xpose.msra.mxu0 0.0
    %30 = vmatpush.xpose.msra.mxu0 0.0
    %31 = vmatpush.xpose.msra.mxu0 0.0
    %32 = vmatpush.xpose.msra.mxu0 0.0
    %33 = vmatpush.xpose.msra.mxu0 0.0
    %34 = vmatpush.xpose.msra.mxu0 0.0
    %35 = vmatpush.xpose.msra.mxu0 0.0
    %36 = vmatpush.xpose.msra.mxu0 0.0
    %37 = vmatpush.xpose.msra.mxu0 %v21
    %38 = vmatpush.xpose.msra.mxu0 %v18
    %39 = vmatmul.f32.gmra.mxu0 %v18
    %v40 = vpop.f32.mrf.mxu0
    %v41 = vadd.f32 0.0, %v40
    %42 = vmatmul.f32.gmra.mxu0 %v21
    %v43 = vpop.f32.mrf.mxu0
    %v44 = vadd.f32 0.0, %v43
    %45 = vdwg.mxu0
    %v46 = vmax.f32 %v41, 0.0
    %v47 = vmax.f32 %v44, 0.0
    %vm48 = vcmask 130048
    %v49 = vsel %vm48, %v46, -inf
    %50 = vmax.xlane.f32.xlu0 %v49
    %v51 = vpop.xlane.xlu0 %50
    %v52 = vsel %vm48, %v47, -inf
    %53 = vmax.xlane.f32.xlu0 %v52
    %v54 = vpop.xlane.xlu0 %53
    %v55 = vsub.f32 %v46, %v51
    %v56 = vsub.f32 %v47, %v54
    %v57 = vmul.f32 %v55, 1.442695
    %v58 = vpow.pop %v57
    %v59 = vmul.f32 %v56, 1.442695
    %v60 = vpow.pop %v59
    %v61 = vsel %vm48, %v58, 0.0
    %62 = vadd.xlane.f32.xlu0 %v61
    %v63 = vpop.xlane.xlu0 %62
    %v64 = vsel %vm48, %v60, 0.0
    %65 = vadd.xlane.f32.xlu0 %v64
    %v66 = vpop.xlane.xlu0 %65
    %v67 = vrcp.pop %v63
    %v68 = vmul.f32 %v63, %v67
    %v69 = vsub.f32 1.0, %v68
    %v70 = vmul.f32 %v67, %v69
    %v71 = vadd.f32 %v67, %v70
    %vm72 = vweird.f32 %v63
    %vm73 = vweird.f32 %v67
    %vm74 = vmor %vm72, %vm73
    %v75 = vsel %vm74, %v67, %v71
    %v76 = vand.u32 2147483647, %v63
    %vm77 = vcmp.eq.f32.partialorder %v76, 8.507059e+37
    %v78 = vand.u32 %v63, 2147483648
    %v79 = vor.u32 1.1754944e-38, %v78
    %v80 = vsel %vm77, %v79, %v75
    %v81 = vmul.f32 %v58, %v80
    %v82 = vrcp.pop %v66
    %v83 = vmul.f32 %v66, %v82
    %v84 = vsub.f32 1.0, %v83
    %v85 = vmul.f32 %v82, %v84
    %v86 = vadd.f32 %v82, %v85
    %vm87 = vweird.f32 %v66
    %vm88 = vweird.f32 %v82
    %vm89 = vmor %vm87, %vm88
    %v90 = vsel %vm89, %v82, %v86
    %v91 = vand.u32 2147483647, %v66
    %vm92 = vcmp.eq.f32.partialorder %v91, 8.507059e+37
    %v93 = vand.u32 %v66, 2147483648
    %v94 = vor.u32 1.1754944e-38, %v93
    %v95 = vsel %vm92, %v94, %v90
    %v96 = vmul.f32 %v60, %v95
    %97 = vst.msk [vmem:[#allocation2] sm:$0xff] %vm48, %v81
    %98 = vst.msk [vmem:[#allocation2 + $0x8] sm:$0xff] %vm48, %v96
    %v99 = vld [vmem:[%s1] sm:$0xff]
    %100 = vmatpush.msra.mxu0 0.0
    %101 = vmatpush.msra.mxu0 0.0
    %102 = vmatpush.msra.mxu0 0.0
    %103 = vmatpush.msra.mxu0 0.0
    %104 = vmatpush.msra.mxu0 0.0
    %105 = vmatpush.msra.mxu0 0.0
    %106 = vmatpush.msra.mxu0 0.0
    %107 = vmatpush.msra.mxu0 0.0
    %108 = vmatpush.msra.mxu0 0.0
    %109 = vmatpush.msra.mxu0 0.0
    %110 = vmatpush.msra.mxu0 0.0
    %111 = vmatpush.msra.mxu0 0.0
    %112 = vmatpush.msra.mxu0 0.0
    %113 = vmatpush.msra.mxu0 0.0
    %114 = vmatpush.msra.mxu0 0.0
    %115 = vmatpush.msra.mxu0 %v99
    %116 = vmatmul.f32.gmra.mxu0 %v18
    %v117 = vpop.f32.mrf.mxu0
    %v118 = vadd.f32 0.0, %v117
    %119 = vmatmul.f32.gmra.mxu0 %v21
    %v120 = vpop.f32.mrf.mxu0
    %v121 = vadd.f32 0.0, %v120
    %122 = vdwg.mxu0
    %123 = vst.msk [vmem:[%s3] sm:$0xff] %vm16, %v118
    %124 = vst.msk [vmem:[%s3 + $0x8] sm:$0xff] %vm16, %v121
    // Predicated region
    $region10: #{tpu_custom_call.1} parent=1 // pred_check
      _
    $region11: #{tpu_custom_call.1} parent=1 // pred_check_branch
      %126 = sbr.rel (0) target = $region13
    $region12: #{tpu_custom_call.1} parent=1 // pred_region
      %128 = vsyncadd [#allocation3], 0
      %s129 = sshll.u32 [#allocation2], 4
      %s130 = int_to_ptr.vmem [resolvable:$true] %s129
      %s131 = sshll.u32 %s2, 4
      %s132 = int_to_ptr.hbm [resolvable:$true] %s131
      %137 = dma.vmem_to_hbm [thread:$0]  %s130, 256, %s132, [#allocation3], 128, 128, 8
    $region13: #{tpu_custom_call.1} parent=1 // pred_fallthru
      _
    // Predicated region
    $region14: #{tpu_custom_call.1} parent=1 // pred_check
      _
    $region15: #{tpu_custom_call.1} parent=1 // pred_check_branch
      %139 = sbr.rel (0) target = $region17
    $region16: #{tpu_custom_call.1} parent=1 // pred_region
      _
    $region17: #{tpu_custom_call.1} parent=1 // pred_fallthru
      _
    // Predicated region
    $region18: #{tpu_custom_call.1} parent=1 // pred_check
      _
    $region19: #{tpu_custom_call.1} parent=1 // pred_check_branch
      %141 = sbr.rel (0) target = $region21
    $region20: #{tpu_custom_call.1} parent=1 // pred_region
      %143 = dma.done [#allocation3], 256
    $region21: #{tpu_custom_call.1} parent=1 // pred_fallthru
      _
    // Predicated region
    $region22: #{tpu_custom_call.1} parent=1 // pred_check
      _
    $region23: #{tpu_custom_call.1} parent=1 // pred_check_branch
      %145 = sbr.rel (0) target = $region25
    $region24: #{tpu_custom_call.1} parent=1 // pred_region
      _
    $region25: #{tpu_custom_call.1} parent=1 // pred_fallthru
      _
    %146 = vsyncpa [#allocation3], 1

</llo_original>
